<compile_context>
chip_gen: v7x
topology: tpu7x:2x2x1
jax: 0.10.0
libtpu: 0.0.40
codegen_flags: <defaults>
</compile_context>

<pallas_src>
import functools

import jax
import jax.numpy as jnp
from jax.experimental import pallas as pl
from jax.experimental.pallas import tpu as pltpu


def _cdiv(a, b):
    return (a + b - 1) // b


def _round_up(x, m):
    return ((x + m - 1) // m) * m


def _ae_loss_kernel(inp_ref, code_ref, logits_ref,
                    enc_ref, dot_ref, lse_ref, *,
                    batch, tb, steps_per_slice, needs_mask,
                    targets_normalized):
    s = pl.program_id(0)          # parallel slice (TensorCore on megacore parts)
    j = pl.program_id(1)          # sequential reduction step within the slice

    @pl.when(j == 0)
    def _init():
        enc_ref[...] = jnp.zeros_like(enc_ref)
        dot_ref[...] = jnp.zeros_like(dot_ref)
        lse_ref[...] = jnp.zeros_like(lse_ref)

    code = code_ref[...].astype(jnp.float32)        # (tb, K)
    logits = logits_ref[...].astype(jnp.float32)    # (tb, C)
    target = inp_ref[...].astype(jnp.float32)       # (tb, C)

    k = code.shape[-1]
    c = logits.shape[-1]

    if needs_mask:
        row = jax.lax.broadcasted_iota(jnp.int32, (tb, 1), 0)
        first_row = (s * steps_per_slice + j) * tb
        valid = (row + first_row) < batch           # (tb, 1)

    # ---- encoder partial: sum(|code|), sublane-group fold (VPU adds only) ---
    abs_code = jnp.abs(code)
    if needs_mask:
        abs_code = jnp.where(valid, abs_code, 0.0)
    enc_ref[...] += jnp.sum(abs_code.reshape(tb // 8, 8, k), axis=0)

    # ---- decoder partial A: sum(target * logits), elementwise accumulation --
    # (no per-row lane reduce; cross-lane sum deferred to the wrapper)
    prod = target * logits
    if needs_mask:
        prod = jnp.where(valid, prod, 0.0)
    dot_ref[...] += jnp.sum(prod.reshape(tb // 8, 8, c), axis=0)

    # ---- decoder partial B: per-row lse * sum(target) ------------------------
    m = jnp.max(logits, axis=-1, keepdims=True)                       # (tb, 1)
    lse = m + jnp.log(jnp.sum(jnp.exp(logits - m), axis=-1, keepdims=True))
    if targets_normalized:
        row_lse = lse
    else:
        t_sum = jnp.sum(target, axis=-1, keepdims=True)               # (tb, 1)
        row_lse = lse * t_sum
    if needs_mask:
        row_lse = jnp.where(valid, row_lse, 0.0)   # select -> padded NaN/Inf can't leak
    lse_ref[...] += jnp.sum(row_lse.reshape(tb // 8, 8, 1), axis=0)


def _vmem_capacity_bytes():
    try:
        cap = getattr(pltpu.get_tpu_info(), "vmem_capacity_bytes", None)
        if cap:
            return int(cap)
    except Exception:
        pass
    return 64 * 1024 * 1024  # conservative (v7x-sized) fallback


def ae_loss2(input_data, code, output_data, encoder_w=1.0, decoder_w=1.0, *,
             tb=None, targets_normalized=False):
    """Pallas implementation of AELoss2.forward.

    input_data : (B, C) float — soft targets (class probabilities)
    code       : (B, K) float — latent code
    output_data: (B, C) float — logits
    returns    : scalar float32 loss
    """
    B, C = input_data.shape
    Bc, K = code.shape
    assert Bc == B and output_data.shape == (B, C)

    itemsizes = [input_data.dtype.itemsize, code.dtype.itemsize,
                 output_data.dtype.itemsize]
    # dtype-native sublane multiple: 8 for f32, 16 for bf16, 32 for int8/fp8.
    sub = max(8, 32 // min(itemsizes))
    bytes_per_row = C * itemsizes[0] + K * itemsizes[1] + C * itemsizes[2]

    if tb is None:
        # ~4 MiB of live input bytes per grid step, capped at 2048 rows.
        target_bytes = 4 << 20
        tb = max(sub, min(2048, target_bytes // max(bytes_per_row, 1)))
    tb = max(sub, (tb // sub) * sub)
    tb = min(tb, _round_up(B, sub))
    if B <= tb and B % 8 == 0:
        tb = B            # full-extent block: no padded rows, no masking

    total_steps = _cdiv(B, tb)
    # Try to make the step count even so the 2-way core split is usable (v7x).
    if total_steps > 1 and total_steps % 2 == 1:
        tb_alt = max(sub, _round_up(_cdiv(B, total_steps + 1), sub))
        if _cdiv(B, tb_alt) % 2 == 0:
            tb = tb_alt
            total_steps = _cdiv(B, tb)

    num_slices = 2 if (total_steps >= 2 and total_steps % 2 == 0) else 1
    steps_per_slice = total_steps // num_slices
    needs_mask = (B % tb) != 0

    vmem_cap = _vmem_capacity_bytes()
    block_bytes = tb * bytes_per_row
    # Actual footprint: 3 inputs x 2 pipeline buffers, plus small accumulators
    # and compiler scratch headroom. Don't hog scoped VMEM.
    vmem_limit = int(min(vmem_cap, 2 * block_bytes + (8 << 20)))

    kernel = functools.partial(
        _ae_loss_kernel,
        batch=B, tb=tb, steps_per_slice=steps_per_slice,
        needs_mask=needs_mask, targets_normalized=bool(targets_normalized))

    in_bytes = (input_data.size * input_data.dtype.itemsize
                + code.size * code.dtype.itemsize
                + output_data.size * output_data.dtype.itemsize)
    cost = pl.CostEstimate(
        flops=int(8 * B * C + 2 * B * K),
        transcendentals=int(B * C + B),
        bytes_accessed=int(in_bytes),
    )

    idx = lambda s, j: (s * steps_per_slice + j, 0)

    enc_part, dot_part, lse_part = pl.pallas_call(
        kernel,
        out_shape=(
            jax.ShapeDtypeStruct((num_slices, 8, K), jnp.float32),
            jax.ShapeDtypeStruct((num_slices, 8, C), jnp.float32),
            jax.ShapeDtypeStruct((num_slices, 8, 1), jnp.float32),
        ),
        grid=(num_slices, steps_per_slice),
        in_specs=[
            pl.BlockSpec((tb, C), idx),   # input_data (soft targets)
            pl.BlockSpec((tb, K), idx),   # code
            pl.BlockSpec((tb, C), idx),   # output_data (logits)
        ],
        out_specs=(
            # Accumulators: resident across the (arbitrary) reduction axis,
            # one slot per parallel slice.
            pl.BlockSpec((None, 8, K), lambda s, j: (s, 0, 0)),
            pl.BlockSpec((None, 8, C), lambda s, j: (s, 0, 0)),
            pl.BlockSpec((None, 8, 1), lambda s, j: (s, 0, 0)),
        ),
        compiler_params=pltpu.CompilerParams(
            dimension_semantics=("parallel", "arbitrary"),
            vmem_limit_bytes=vmem_limit,
        ),
        cost_estimate=cost,
    )(input_data, code, output_data)

    # Final cross-lane/slice reductions + scaling (tiny; done in plain XLA).
    enc_sum = jnp.sum(enc_part)
    dec_sum = jnp.sum(lse_part) - jnp.sum(dot_part)
    enc_loss = enc_sum / float(B * K)
    dec_loss = dec_sum / float(B)
    return float(encoder_w) * enc_loss + float(decoder_w) * dec_loss


def _reference(input_data, code, output_data, encoder_w=1.0, decoder_w=1.0):
    enc = jnp.mean(jnp.abs(code.astype(jnp.float32)))
    logits = output_data.astype(jnp.float32)
    tgt = input_data.astype(jnp.float32)
    logsm = jax.nn.log_softmax(logits, axis=-1)
    dec = jnp.mean(-jnp.sum(tgt * logsm, axis=-1))
    return encoder_w * enc + decoder_w * dec


if __name__ == "__main__":
    key = jax.random.PRNGKey(0)
    k1, k2, k3 = jax.random.split(key, 3)

    # --- test 1: small aligned shapes, single block -----------------------
    B, C, K = 8, 128, 128
    input_data = jax.nn.softmax(jax.random.normal(k1, (B, C), jnp.float32), axis=-1)
    code = jax.random.normal(k2, (B, K), jnp.float32)
    output_data = jax.random.normal(k3, (B, C), jnp.float32)

    loss = jax.block_until_ready(ae_loss2(input_data, code, output_data, 1.0, 1.0))
    ref = _reference(input_data, code, output_data, 1.0, 1.0)
    assert jnp.allclose(loss, ref, rtol=1e-5, atol=1e-5), (loss, ref)

    # --- test 2: multi-block grid, 2-way parallel split, masked last block -
    B2, C2, K2 = 20, 256, 128
    k4, k5, k6 = jax.random.split(jax.random.PRNGKey(1), 3)
    inp2 = jax.nn.softmax(jax.random.normal(k4, (B2, C2), jnp.float32), axis=-1)
    code2 = jax.random.normal(k5, (B2, K2), jnp.float32)
    out2 = jax.random.normal(k6, (B2, C2), jnp.float32)

    loss2 = jax.block_until_ready(ae_loss2(inp2, code2, out2, 0.7, 1.3, tb=16))
    ref2 = _reference(inp2, code2, out2, 0.7, 1.3)
    assert jnp.allclose(loss2, ref2, rtol=1e-5, atol=1e-5), (loss2, ref2)

    # --- test 3: bf16 inputs (bandwidth path); kernel upcasts to f32 ------
    loss3 = jax.block_until_ready(
        ae_loss2(input_data.astype(jnp.bfloat16),
                 code.astype(jnp.bfloat16),
                 output_data.astype(jnp.bfloat16)))
    ref3 = _reference(input_data.astype(jnp.bfloat16),
                      code.astype(jnp.bfloat16),
                      output_data.astype(jnp.bfloat16))
    assert jnp.allclose(loss3, ref3, rtol=1e-4, atol=1e-4), (loss3, ref3)

    print("KERNEL_OK")
</pallas_src>

<mosaic_0001>
module attributes {stable_mosaic.version = 11 : i64} {
  func.func @_ae_loss_kernel(%arg0: i32, %arg1: i32, %arg2: memref<8x128xf32, #tpu.memory_space<vmem>>, %arg3: memref<8x128xf32, #tpu.memory_space<vmem>>, %arg4: memref<8x128xf32, #tpu.memory_space<vmem>>, %arg5: memref<1x8x128xf32, #tpu.memory_space<vmem>>, %arg6: memref<1x8x128xf32, #tpu.memory_space<vmem>>, %arg7: memref<1x8x1xf32, #tpu.memory_space<vmem>>) attributes {dimension_semantics = [#tpu.dimension_semantics<parallel>, #tpu.dimension_semantics<arbitrary>], iteration_bounds = array<i64: 1, 1>, scalar_prefetch = 0 : i64, scratch_operands = 0 : i64, tpu.core_type = #tpu.core_type<tc>, window_params = [{transform_indices = @transform_0, window_bounds = array<i64: 8, 128>}, {transform_indices = @transform_1, window_bounds = array<i64: 8, 128>}, {transform_indices = @transform_2, window_bounds = array<i64: 8, 128>}, {transform_indices = @transform_3, window_bounds = array<i64: 1, 8, 128>}, {transform_indices = @transform_4, window_bounds = array<i64: 1, 8, 128>}, {transform_indices = @transform_5, window_bounds = array<i64: 1, 8, 1>}]} {
    %c0_i32 = arith.constant 0 : i32
    %0 = arith.cmpi eq, %arg1, %c0_i32 : i32
    %1 = arith.extui %0 : i1 to i32
    %c0_i32_0 = arith.constant 0 : i32
    %2 = arith.cmpi ne, %1, %c0_i32_0 : i32
    scf.if %2 {
      %cst_29 = arith.constant 0.000000e+00 : f32
      %44 = vector.broadcast %cst_29 : f32 to vector<8x128xf32>
      %c0_30 = arith.constant 0 : index
      %c0_31 = arith.constant 0 : index
      %c0_32 = arith.constant 0 : index
      %45 = vector.load %arg5[%c0_30, %c0_31, %c0_32] : memref<1x8x128xf32, #tpu.memory_space<vmem>>, vector<1x8x128xf32>
      %46 = vector.shape_cast %45 : vector<1x8x128xf32> to vector<8x128xf32>
      %47 = vector.shape_cast %44 : vector<8x128xf32> to vector<1x8x128xf32>
      tpu.vector_store %arg5[%c0_30, %c0_31, %c0_32], %47 {strides = array<i32>} : memref<1x8x128xf32, #tpu.memory_space<vmem>>, vector<1x8x128xf32>,
      %cst_33 = arith.constant 0.000000e+00 : f32
      %48 = vector.broadcast %cst_33 : f32 to vector<8x128xf32>
      %c0_34 = arith.constant 0 : index
      %c0_35 = arith.constant 0 : index
      %c0_36 = arith.constant 0 : index
      %49 = vector.load %arg6[%c0_34, %c0_35, %c0_36] : memref<1x8x128xf32, #tpu.memory_space<vmem>>, vector<1x8x128xf32>
      %50 = vector.shape_cast %49 : vector<1x8x128xf32> to vector<8x128xf32>
      %51 = vector.shape_cast %48 : vector<8x128xf32> to vector<1x8x128xf32>
      tpu.vector_store %arg6[%c0_34, %c0_35, %c0_36], %51 {strides = array<i32>} : memref<1x8x128xf32, #tpu.memory_space<vmem>>, vector<1x8x128xf32>,
      %cst_37 = arith.constant 0.000000e+00 : f32
      %52 = vector.broadcast %cst_37 : f32 to vector<8x1xf32>
      %c0_38 = arith.constant 0 : index
      %c0_39 = arith.constant 0 : index
      %c0_40 = arith.constant 0 : index
      %53 = vector.load %arg7[%c0_38, %c0_39, %c0_40] : memref<1x8x1xf32, #tpu.memory_space<vmem>>, vector<1x8x1xf32>
      %54 = vector.shape_cast %53 : vector<1x8x1xf32> to vector<8x1xf32>
      %55 = vector.shape_cast %52 : vector<8x1xf32> to vector<1x8x1xf32>
      tpu.vector_store %arg7[%c0_38, %c0_39, %c0_40], %55 {strides = array<i32>} : memref<1x8x1xf32, #tpu.memory_space<vmem>>, vector<1x8x1xf32>,
    } else {
    }
    %c0 = arith.constant 0 : index
    %c0_1 = arith.constant 0 : index
    %3 = vector.load %arg3[%c0, %c0_1] : memref<8x128xf32, #tpu.memory_space<vmem>>, vector<8x128xf32>
    %c0_2 = arith.constant 0 : index
    %c0_3 = arith.constant 0 : index
    %4 = vector.load %arg4[%c0_2, %c0_3] : memref<8x128xf32, #tpu.memory_space<vmem>>, vector<8x128xf32>
    %c0_4 = arith.constant 0 : index
    %c0_5 = arith.constant 0 : index
    %5 = vector.load %arg2[%c0_4, %c0_5] : memref<8x128xf32, #tpu.memory_space<vmem>>, vector<8x128xf32>
    %6 = math.absf %3 : vector<8x128xf32>
    %c0_6 = arith.constant 0 : index
    %c0_7 = arith.constant 0 : index
    %c0_8 = arith.constant 0 : index
    %7 = vector.load %arg5[%c0_6, %c0_7, %c0_8] : memref<1x8x128xf32, #tpu.memory_space<vmem>>, vector<1x8x128xf32>
    %8 = vector.shape_cast %7 : vector<1x8x128xf32> to vector<8x128xf32>
    %9 = vector.shape_cast %6 : vector<8x128xf32> to vector<1x8x128xf32>
    %cst = arith.constant dense<0.000000e+00> : vector<8x128xf32>
    %10 = vector.multi_reduction <add>, %9, %cst [0] : vector<1x8x128xf32> to vector<8x128xf32>
    %11 = arith.addf %8, %10 : vector<8x128xf32>
    %c0_9 = arith.constant 0 : index
    %c0_10 = arith.constant 0 : index
    %c0_11 = arith.constant 0 : index
    %12 = vector.load %arg5[%c0_9, %c0_10, %c0_11] : memref<1x8x128xf32, #tpu.memory_space<vmem>>, vector<1x8x128xf32>
    %13 = vector.shape_cast %12 : vector<1x8x128xf32> to vector<8x128xf32>
    %14 = vector.shape_cast %11 : vector<8x128xf32> to vector<1x8x128xf32>
    tpu.vector_store %arg5[%c0_9, %c0_10, %c0_11], %14 {strides = array<i32>} : memref<1x8x128xf32, #tpu.memory_space<vmem>>, vector<1x8x128xf32>,
    %15 = arith.mulf %5, %4 : vector<8x128xf32>
    %c0_12 = arith.constant 0 : index
    %c0_13 = arith.constant 0 : index
    %c0_14 = arith.constant 0 : index
    %16 = vector.load %arg6[%c0_12, %c0_13, %c0_14] : memref<1x8x128xf32, #tpu.memory_space<vmem>>, vector<1x8x128xf32>
    %17 = vector.shape_cast %16 : vector<1x8x128xf32> to vector<8x128xf32>
    %18 = vector.shape_cast %15 : vector<8x128xf32> to vector<1x8x128xf32>
    %cst_15 = arith.constant dense<0.000000e+00> : vector<8x128xf32>
    %19 = vector.multi_reduction <add>, %18, %cst_15 [0] : vector<1x8x128xf32> to vector<8x128xf32>
    %20 = arith.addf %17, %19 : vector<8x128xf32>
    %c0_16 = arith.constant 0 : index
    %c0_17 = arith.constant 0 : index
    %c0_18 = arith.constant 0 : index
    %21 = vector.load %arg6[%c0_16, %c0_17, %c0_18] : memref<1x8x128xf32, #tpu.memory_space<vmem>>, vector<1x8x128xf32>
    %22 = vector.shape_cast %21 : vector<1x8x128xf32> to vector<8x128xf32>
    %23 = vector.shape_cast %20 : vector<8x128xf32> to vector<1x8x128xf32>
    tpu.vector_store %arg6[%c0_16, %c0_17, %c0_18], %23 {strides = array<i32>} : memref<1x8x128xf32, #tpu.memory_space<vmem>>, vector<1x8x128xf32>,
    %cst_19 = arith.constant dense<0xFF800000> : vector<8xf32>
    %24 = vector.multi_reduction <maximumf>, %4, %cst_19 [1] : vector<8x128xf32> to vector<8xf32>
    %25 = vector.shape_cast %24 : vector<8xf32> to vector<8x1xf32>
    %26 = vector.broadcast %25 : vector<8x1xf32> to vector<8x128xf32>
    %27 = arith.subf %4, %26 : vector<8x128xf32>
    %28 = math.exp %27 : vector<8x128xf32>
    %cst_20 = arith.constant dense<0.000000e+00> : vector<8xf32>
    %29 = vector.multi_reduction <add>, %28, %cst_20 [1] : vector<8x128xf32> to vector<8xf32>
    %30 = vector.shape_cast %29 : vector<8xf32> to vector<8x1xf32>
    %31 = math.log %30 : vector<8x1xf32>
    %32 = arith.addf %25, %31 : vector<8x1xf32>
    %cst_21 = arith.constant dense<0.000000e+00> : vector<8xf32>
    %33 = vector.multi_reduction <add>, %5, %cst_21 [1] : vector<8x128xf32> to vector<8xf32>
    %34 = vector.shape_cast %33 : vector<8xf32> to vector<8x1xf32>
    %35 = arith.mulf %32, %34 : vector<8x1xf32>
    %c0_22 = arith.constant 0 : index
    %c0_23 = arith.constant 0 : index
    %c0_24 = arith.constant 0 : index
    %36 = vector.load %arg7[%c0_22, %c0_23, %c0_24] : memref<1x8x1xf32, #tpu.memory_space<vmem>>, vector<1x8x1xf32>
    %37 = vector.shape_cast %36 : vector<1x8x1xf32> to vector<8x1xf32>
    %38 = vector.shape_cast %35 : vector<8x1xf32> to vector<1x8x1xf32>
    %cst_25 = arith.constant dense<0.000000e+00> : vector<8x1xf32>
    %39 = vector.multi_reduction <add>, %38, %cst_25 [0] : vector<1x8x1xf32> to vector<8x1xf32>
    %40 = arith.addf %37, %39 : vector<8x1xf32>
    %c0_26 = arith.constant 0 : index
    %c0_27 = arith.constant 0 : index
    %c0_28 = arith.constant 0 : index
    %41 = vector.load %arg7[%c0_26, %c0_27, %c0_28] : memref<1x8x1xf32, #tpu.memory_space<vmem>>, vector<1x8x1xf32>
    %42 = vector.shape_cast %41 : vector<1x8x1xf32> to vector<8x1xf32>
    %43 = vector.shape_cast %40 : vector<8x1xf32> to vector<1x8x1xf32>
    tpu.vector_store %arg7[%c0_26, %c0_27, %c0_28], %43 {strides = array<i32>} : memref<1x8x1xf32, #tpu.memory_space<vmem>>, vector<1x8x1xf32>,
    return
  }
  func.func @transform_0(%arg0: i32, %arg1: i32) -> (i32, i32) {
    %c1_i32 = arith.constant 1 : i32
    %0 = arith.muli %arg0, %c1_i32 : i32
    %1 = arith.addi %0, %arg1 : i32
    %c0_i32 = arith.constant 0 : i32
    %c0_i32_0 = arith.constant 0 : i32
    return %1, %c0_i32 : i32, i32
  }
  func.func @transform_1(%arg0: i32, %arg1: i32) -> (i32, i32) {
    %c1_i32 = arith.constant 1 : i32
    %0 = arith.muli %arg0, %c1_i32 : i32
    %1 = arith.addi %0, %arg1 : i32
    %c0_i32 = arith.constant 0 : i32
    %c0_i32_0 = arith.constant 0 : i32
    return %1, %c0_i32 : i32, i32
  }
  func.func @transform_2(%arg0: i32, %arg1: i32) -> (i32, i32) {
    %c1_i32 = arith.constant 1 : i32
    %0 = arith.muli %arg0, %c1_i32 : i32
    %1 = arith.addi %0, %arg1 : i32
    %c0_i32 = arith.constant 0 : i32
    %c0_i32_0 = arith.constant 0 : i32
    return %1, %c0_i32 : i32, i32
  }
  func.func @transform_3(%arg0: i32, %arg1: i32) -> (i32, i32, i32) {
    %c0_i32 = arith.constant 0 : i32
    %c0_i32_0 = arith.constant 0 : i32
    %c0_i32_1 = arith.constant 0 : i32
    return %arg0, %c0_i32, %c0_i32_0 : i32, i32, i32
  }
  func.func @transform_4(%arg0: i32, %arg1: i32) -> (i32, i32, i32) {
    %c0_i32 = arith.constant 0 : i32
    %c0_i32_0 = arith.constant 0 : i32
    %c0_i32_1 = arith.constant 0 : i32
    return %arg0, %c0_i32, %c0_i32_0 : i32, i32, i32
  }
  func.func @transform_5(%arg0: i32, %arg1: i32) -> (i32, i32, i32) {
    %c0_i32 = arith.constant 0 : i32
    %c0_i32_0 = arith.constant 0 : i32
    %c0_i32_1 = arith.constant 0 : i32
    return %arg0, %c0_i32, %c0_i32_0 : i32, i32, i32
  }
}

</mosaic_0001>

<llo_original>
// kernel: tpu_custom_call.1
$region0: #{tpu_custom_call.1}
  #allocation0 [shape = 'u32[]', space=smem, size = 0x4, offset = 0x4, fixed_abs, tag = 'smem constant byte address 0x4 - core index']
  #allocation1 [shape = 'u32[144,128]{1,0:T(1,128)}', space=vmem, size = 0x12000, scoped, tag = 'internal scratch']
  %s0 = inlined_call_operand.hbm [shape: f32[8,128], index: 0, kind: input, shape index: {}]
  %s1 = inlined_call_operand.hbm [shape: f32[8,128], index: 1, kind: input, shape index: {}]
  %s2 = inlined_call_operand.hbm [shape: f32[8,128], index: 2, kind: input, shape index: {}]
  %s3 = inlined_call_operand.hbm [shape: f32[1,8,128], index: 3, kind: output, shape index: {0}]
  %s4 = inlined_call_operand.hbm [shape: f32[1,8,128], index: 4, kind: output, shape index: {1}]
  %s5 = inlined_call_operand.vmem [shape: f32[1,8,1], index: 5, kind: output, shape index: {2}]
  %6 = xla_tuple %s3, %s4, %s5
  %s7 = sld [smem:[#allocation0]]
  $region54: #{tpu_custom_call.1} parent=0
    _
  %s9 = ssub.s32 1, %s7
  %s10 = scalar_select 0, %s9, %s7
  $region1: #{tpu_custom_call.1} parent=0
    #allocation2 [shape = 'u8[4096]{0}', space=vmem, size = 0x1000, scoped, tag = 'input window, operand 0, single buffered']
    #allocation3 [shape = 's32[1]{0}', space=sflag, size = 0x4, scoped, tag = 'scoped memory for tpu_custom_call.1']
    #allocation4 [shape = 's32[1]{0}', space=sflag, size = 0x4, scoped, tag = 'scoped memory for tpu_custom_call.1']
    #allocation5 [shape = 'u8[4096]{0}', space=vmem, size = 0x1000, scoped, tag = 'input window, operand 1, single buffered']
    #allocation6 [shape = 's32[1]{0}', space=sflag, size = 0x4, scoped, tag = 'scoped memory for tpu_custom_call.1']
    #allocation7 [shape = 'u8[4096]{0}', space=vmem, size = 0x1000, scoped, tag = 'input window, operand 2, single buffered']
    #allocation8 [shape = 'u8[4096]{0}', space=vmem, size = 0x1000, scoped, tag = 'output window, operand 0, single buffered']
    #allocation9 [shape = 'u8[4096]{0}', space=vmem, size = 0x1000, scoped, tag = 'output window, operand 1, single buffered']
    #allocation10 [shape = 's32[1]{0}', space=sflag, size = 0x4, scoped, tag = 'scoped memory for tpu_custom_call.1']
    %11 = vsyncpa [#allocation3], 0
    %12 = vsyncpa [#allocation6], 0
    %13 = vsyncpa [#allocation4], 0
    %14 = vsyncpa [#allocation10], 0
    // Predicated region
    $region2: #{tpu_custom_call.1} parent=1 // pred_check
      _
    $region3: #{tpu_custom_call.1} parent=1 // pred_check_branch
      %16 = sbr.rel (0) target = $region5
    $region4: #{tpu_custom_call.1} parent=1 // pred_region
      %s17 = sadd.s32 0, 0
      %s19 = ssub.s32 128, 128
      %20 = vsyncadd [#allocation3], %s19
      %s21 = smul.addr %s17, 128
      %s22 = scalar_lea.hbm %s0, %s21
      %s24 = sshll.u32 [#allocation2], 4
      %s25 = int_to_ptr.vmem [resolvable:$true] %s24
      %27 = dma.hbm_to_vmem [thread:$0]  %s22, 128, %s25, [#allocation3]
    $region5: #{tpu_custom_call.1} parent=1 // pred_fallthru
      _
    // Predicated region
    $region6: #{tpu_custom_call.1} parent=1 // pred_check
      _
    $region7: #{tpu_custom_call.1} parent=1 // pred_check_branch
      %29 = sbr.rel (0) target = $region9
    $region8: #{tpu_custom_call.1} parent=1 // pred_region
      %s30 = sadd.s32 0, 0
      %s32 = ssub.s32 128, 128
      %33 = vsyncadd [#allocation6], %s32
      %s34 = smul.addr %s30, 128
      %s35 = scalar_lea.hbm %s1, %s34
      %s37 = sshll.u32 [#allocation5], 4
      %s38 = int_to_ptr.vmem [resolvable:$true] %s37
      %40 = dma.hbm_to_vmem [thread:$0]  %s35, 128, %s38, [#allocation6]
    $region9: #{tpu_custom_call.1} parent=1 // pred_fallthru
      _
    // Predicated region
    $region10: #{tpu_custom_call.1} parent=1 // pred_check
      _
    $region11: #{tpu_custom_call.1} parent=1 // pred_check_branch
      %42 = sbr.rel (0) target = $region13
    $region12: #{tpu_custom_call.1} parent=1 // pred_region
      %s43 = sadd.s32 0, 0
      %s45 = ssub.s32 128, 128
      %46 = vsyncadd [#allocation6], %s45
      %s47 = smul.addr %s43, 128
      %s48 = scalar_lea.hbm %s2, %s47
      %s50 = sshll.u32 [#allocation7], 4
      %s51 = int_to_ptr.vmem [resolvable:$true] %s50
      %53 = dma.hbm_to_vmem [thread:$0]  %s48, 128, %s51, [#allocation6]
    $region13: #{tpu_custom_call.1} parent=1 // pred_fallthru
      _
    // Predicated region
    $region14: #{tpu_custom_call.1} parent=1 // pred_check
      _
    $region15: #{tpu_custom_call.1} parent=1 // pred_check_branch
      %55 = sbr.rel (0) target = $region17
    $region16: #{tpu_custom_call.1} parent=1 // pred_region
      %56 = dma.done [#allocation3], 128
    $region17: #{tpu_custom_call.1} parent=1 // pred_fallthru
      _
    // Predicated region
    $region18: #{tpu_custom_call.1} parent=1 // pred_check
      _
    $region19: #{tpu_custom_call.1} parent=1 // pred_check_branch
      %58 = sbr.rel (0) target = $region21
    $region20: #{tpu_custom_call.1} parent=1 // pred_region
      %59 = dma.done [#allocation6], 128
    $region21: #{tpu_custom_call.1} parent=1 // pred_fallthru
      _
    // Predicated region
    $region22: #{tpu_custom_call.1} parent=1 // pred_check
      _
    $region23: #{tpu_custom_call.1} parent=1 // pred_check_branch
      %61 = sbr.rel (0) target = $region25
    $region24: #{tpu_custom_call.1} parent=1 // pred_region
      %62 = dma.done [#allocation6], 128
    $region25: #{tpu_custom_call.1} parent=1 // pred_fallthru
      _
    %s63 = sadd.s32 0, 0
    %s64 = sadd.s32 0, 0
    %s65 = sadd.s32 0, 0
    %p66 = scmp.eq.s32.totalorder 0, 0
    // Predicated region
    $region26: #{tpu_custom_call.1} parent=1 // pred_check
      %p67 = pneg %p66
    $region27: #{tpu_custom_call.1} parent=1 // pred_check_branch
      %69 = sbr.rel (%p67) target = $region29
    $region28: #{tpu_custom_call.1} parent=1 // pred_region
      %70 = vst [vmem:[#allocation8] sm:$0xff] 0.0
      %71 = vst [vmem:[#allocation9] sm:$0xff] 0.0
      %vm72 = vcmask 7168
      %73 = vst.msk [vmem:[%s5] sm:$0xff] %vm72, 0.0
    $region29: #{tpu_custom_call.1} parent=1 // pred_fallthru
      _
    %v74 = vld [vmem:[#allocation5] sm:$0xff]
    %v75 = vld [vmem:[#allocation7] sm:$0xff]
    %v76 = vld [vmem:[#allocation2] sm:$0xff]
    %v77 = vand.u32 2147483647, %v74
    %v78 = vld [vmem:[#allocation8] sm:$0xff]
    %v79 = vadd.f32 %v77, 0.0
    %v80 = vadd.f32 %v78, %v79
    %81 = vst [vmem:[#allocation8] sm:$0xff] %v80
    %v82 = vmul.f32 %v76, %v75
    %v83 = vld [vmem:[#allocation9] sm:$0xff]
    %v84 = vadd.f32 %v82, 0.0
    %v85 = vadd.f32 %v83, %v84
    %86 = vst [vmem:[#allocation9] sm:$0xff] %v85
    %87 = vmax.xlane.f32.xlu0 %v75
    %v88 = vpop.xlane.xlu0 %87
    %v89 = vsub.f32 %v75, %v88
    %v90 = vmul.f32 %v89, 1.442695
    %v91 = vpow.pop %v90
    %92 = vadd.xlane.f32.xlu0 %v91
    %v93 = vpop.xlane.xlu0 %92
    %v94 = vlog2.pop %v93
    %v95 = vmul.f32 %v94, 0.6931472
    %v96 = vadd.f32 %v88, %v95
    %97 = vadd.xlane.f32.xlu0 %v76
    %v98 = vpop.xlane.xlu0 %97
    %v99 = vmul.f32 %v96, %v98
    %v100 = vld [vmem:[%s5] sm:$0xff]
    %v101 = vadd.f32 %v99, 0.0
    %v102 = vadd.f32 %v100, %v101
    %vm103 = vcmask 7168
    %104 = vst.msk [vmem:[%s5] sm:$0xff] %vm103, %v102
    // Predicated region
    $region30: #{tpu_custom_call.1} parent=1 // pred_check
      _
    $region31: #{tpu_custom_call.1} parent=1 // pred_check_branch
      %106 = sbr.rel (0) target = $region33
    $region32: #{tpu_custom_call.1} parent=1 // pred_region
      %s108 = ssub.s32 128, 128
      %109 = vsyncadd [#allocation4], %s108
      %s111 = sshll.u32 [#allocation8], 4
      %s112 = int_to_ptr.vmem [resolvable:$true] %s111
      %114 = dma.vmem_to_hbm [thread:$0]  %s112, 128, %s3, [#allocation4]
    $region33: #{tpu_custom_call.1} parent=1 // pred_fallthru
      _
    // Predicated region
    $region34: #{tpu_custom_call.1} parent=1 // pred_check
      _
    $region35: #{tpu_custom_call.1} parent=1 // pred_check_branch
      %116 = sbr.rel (0) target = $region37
    $region36: #{tpu_custom_call.1} parent=1 // pred_region
      %s118 = ssub.s32 128, 128
      %119 = vsyncadd [#allocation10], %s118
      %s121 = sshll.u32 [#allocation9], 4
      %s122 = int_to_ptr.vmem [resolvable:$true] %s121
      %124 = dma.vmem_to_hbm [thread:$0]  %s122, 128, %s4, [#allocation10]
    $region37: #{tpu_custom_call.1} parent=1 // pred_fallthru
      _
    // Predicated region
    $region38: #{tpu_custom_call.1} parent=1 // pred_check
      _
    $region39: #{tpu_custom_call.1} parent=1 // pred_check_branch
      %126 = sbr.rel (0) target = $region41
    $region40: #{tpu_custom_call.1} parent=1 // pred_region
      _
    $region41: #{tpu_custom_call.1} parent=1 // pred_fallthru
      _
    // Predicated region
    $region42: #{tpu_custom_call.1} parent=1 // pred_check
      _
    $region43: #{tpu_custom_call.1} parent=1 // pred_check_branch
      %128 = sbr.rel (0) target = $region45
    $region44: #{tpu_custom_call.1} parent=1 // pred_region
      %129 = dma.done [#allocation4], 128
    $region45: #{tpu_custom_call.1} parent=1 // pred_fallthru
      _
    // Predicated region
    $region46: #{tpu_custom_call.1} parent=1 // pred_check
      _
    $region47: #{tpu_custom_call.1} parent=1 // pred_check_branch
      %131 = sbr.rel (0) target = $region49
    $region48: #{tpu_custom_call.1} parent=1 // pred_region
      %132 = dma.done [#allocation10], 128
    $region49: #{tpu_custom_call.1} parent=1 // pred_fallthru
      _
    // Predicated region
    $region50: #{tpu_custom_call.1} parent=1 // pred_check
      _
    $region51: #{tpu_custom_call.1} parent=1 // pred_check_branch
      %134 = sbr.rel (0) target = $region53
    $region52: #{tpu_custom_call.1} parent=1 // pred_region
      _
    $region53: #{tpu_custom_call.1} parent=1 // pred_fallthru
      _
    %135 = vsyncpa [#allocation3], 1
    %136 = vsyncpa [#allocation6], 1
    %137 = vsyncpa [#allocation4], 1
    %138 = vsyncpa [#allocation10], 1

</llo_original>
